<compile_context>
chip_gen: v5e
topology: v5e:2x2
jax: 0.10.0
libtpu: 0.0.40
codegen_flags: <defaults>
</compile_context>

<pallas_src>
import functools

import jax
import jax.numpy as jnp
from jax.experimental import pallas as pl
from jax.experimental.pallas import tpu as pltpu


_VMEM = pl.BlockSpec(memory_space=pltpu.MemorySpace.VMEM)


# ----------------------------------------------------------------------------
# Fused forward kernel
# ----------------------------------------------------------------------------
def _fused_forward_kernel(adj_ref, x_ref, *refs, n_blocks, num_graphs,
                          nodes_per_graph, channels, pool_channels):
    """Entire SketchOneLine forward, VMEM-resident.

    refs layout (inputs, then output, then scratch):
      [head w_self, head w_neigh, head b]
      n_blocks * [w_self, w_neigh, b]
      [pool w, pool b] [seg1 w, seg1 b] [seg2 w, seg2 b]
      o_ref, cat_ref
    """
    idx = 0
    h_ws, h_wn, h_b = refs[idx:idx + 3]
    idx += 3
    blocks = []
    for _ in range(n_blocks):
        blocks.append(refs[idx:idx + 3])
        idx += 3
    pool_w, pool_b = refs[idx:idx + 2]
    idx += 2
    s1_w, s1_b = refs[idx:idx + 2]
    idx += 2
    s2_w, s2_b = refs[idx:idx + 2]
    idx += 2
    o_ref, cat_ref = refs[idx], refs[idx + 1]

    adj = adj_ref[...]                                  # (BN, BN), row-normed

    def gconv(h, ws_ref, wn_ref, b_ref):
        agg = jnp.dot(adj, h, preferred_element_type=jnp.float32)
        out = (jnp.dot(h, ws_ref[...], preferred_element_type=jnp.float32)
               + jnp.dot(agg, wn_ref[...], preferred_element_type=jnp.float32)
               + b_ref[...])
        return jnp.maximum(out, 0.0)

    # head GraphConv: (BN, Fin_pad) -> (BN, C); lane slice 0 of the slab
    cur = gconv(x_ref[...], h_ws, h_wn, h_b)
    cat_ref[:, 0:channels] = cur

    # ResGcn backbone: each block appends its output to its channel slice
    for i, (ws, wn, bb) in enumerate(blocks):
        cur = gconv(cur, ws, wn, bb) + cur              # residual
        lo = (i + 1) * channels
        cat_ref[:, lo:lo + channels] = cur

    dense_c = channels * (n_blocks + 1)                 # 128 lanes = full vreg
    dense = cat_ref[:, 0:dense_c]                       # (BN, 128)

    # MaxPool fusion: project -> per-sketch max (contiguous rows) -> broadcast
    pooled = jnp.maximum(
        jnp.dot(dense, pool_w[...], preferred_element_type=jnp.float32)
        + pool_b[...], 0.0)                             # (BN, Pc)
    for g in range(num_graphs):                         # static tiny trip count
        r0 = g * nodes_per_graph
        seg = pooled[r0:r0 + nodes_per_graph, :]
        gmax = jnp.max(seg, axis=0, keepdims=True)      # (1, Pc)
        cat_ref[r0:r0 + nodes_per_graph,
                dense_c:dense_c + pool_channels] = jnp.broadcast_to(
                    gmax, (nodes_per_graph, pool_channels))

    # segment MLP (eval-mode BatchNorm folded into weights) + LogSoftmax(dim=1)
    xcat = cat_ref[...]                                 # (BN, 160)
    h1 = jnp.maximum(
        jnp.dot(xcat, s1_w[...], preferred_element_type=jnp.float32)
        + s1_b[...], 0.0)
    logits = (jnp.dot(h1, s2_w[...], preferred_element_type=jnp.float32)
              + s2_b[...])
    m = jnp.max(logits, axis=1, keepdims=True)
    z = logits - m
    o_ref[...] = z - jnp.log(jnp.sum(jnp.exp(z), axis=1, keepdims=True))


# ----------------------------------------------------------------------------
# pallas_call wrapper (single fused call, full-array VMEM blocks)
# ----------------------------------------------------------------------------
def sketch_one_line_forward(prepped, x_pad, adj, *, num_graphs,
                            nodes_per_graph):
    bn = x_pad.shape[0]
    fin_pad = x_pad.shape[1]
    channels = prepped["head"][0].shape[1]
    n_blocks = len(prepped["blocks"])
    pool_channels = prepped["pool"][0].shape[1]
    hidden = prepped["seg1"][0].shape[1]
    out_c = prepped["seg2"][0].shape[1]
    dense_c = channels * (n_blocks + 1)
    cat_c = dense_c + pool_channels

    args = [adj, x_pad]
    args += list(prepped["head"])
    for blk in prepped["blocks"]:
        args += list(blk)
    args += list(prepped["pool"])
    args += list(prepped["seg1"])
    args += list(prepped["seg2"])

    # rough cost hint for the XLA scheduler
    flops = 2 * bn * bn * fin_pad + 4 * bn * fin_pad * channels        # head
    flops += n_blocks * (2 * bn * bn * channels + 4 * bn * channels * channels)
    flops += 2 * bn * dense_c * pool_channels                          # pool
    flops += 2 * bn * cat_c * hidden + 2 * bn * hidden * out_c         # seg
    bytes_accessed = sum(int(a.size) * 4 for a in args) + bn * out_c * 4

    kern = functools.partial(
        _fused_forward_kernel, n_blocks=n_blocks, num_graphs=num_graphs,
        nodes_per_graph=nodes_per_graph, channels=channels,
        pool_channels=pool_channels)

    return pl.pallas_call(
        kern,
        out_shape=jax.ShapeDtypeStruct((bn, out_c), jnp.float32),
        in_specs=[_VMEM] * len(args),
        out_specs=_VMEM,
        scratch_shapes=[pltpu.VMEM((bn, cat_c), jnp.float32)],
        compiler_params=pltpu.CompilerParams(
            vmem_limit_bytes=16 * 1024 * 1024),
        cost_estimate=pl.CostEstimate(
            flops=int(flops),
            transcendentals=int(bn * (out_c + 1)),
            bytes_accessed=int(bytes_accessed)),
    )(*args)


# ----------------------------------------------------------------------------
# Parameter init (deterministic synthetic), BN-fold / padding, reference
# ----------------------------------------------------------------------------
def _gconv_params(key, fin, fout):
    k1, k2 = jax.random.split(key)
    return {
        "w_self": 0.1 * jax.random.normal(k1, (fin, fout), jnp.float32),
        "w_neigh": 0.1 * jax.random.normal(k2, (fin, fout), jnp.float32),
        "b": jnp.zeros((1, fout), jnp.float32),
    }


def _linear_params(key, fin, fout):
    return {
        "w": 0.1 * jax.random.normal(key, (fin, fout), jnp.float32),
        "b": jnp.zeros((1, fout), jnp.float32),
        "scale": jnp.ones((1, fout), jnp.float32),   # eval-mode BN gamma/rstd
        "shift": jnp.zeros((1, fout), jnp.float32),  # eval-mode BN beta/mean
    }


def init_params(key, opt):
    keys = jax.random.split(key, opt["n_blocks"] + 4)
    dense_c = opt["channels"] * (opt["n_blocks"] + 1)
    mlp_in = dense_c + opt["pool_channels"]
    return {
        "head": _gconv_params(keys[0], opt["in_feature"], opt["channels"]),
        "blocks": [
            _gconv_params(keys[1 + i], opt["channels"], opt["channels"])
            for i in range(opt["n_blocks"])
        ],
        "pool": _linear_params(keys[-3], dense_c, opt["pool_channels"]),
        "seg1": _linear_params(keys[-2], mlp_in, opt["mlp_segment"][0]),
        "seg2": _linear_params(keys[-1], opt["mlp_segment"][0],
                               opt["out_segment"]),
    }


def prepare_params(params, fin_pad):
    """Fold eval-mode BatchNorm into linears, pad head K-dim, pack tuples."""
    def fold(p):
        return (p["w"] * p["scale"], p["b"] * p["scale"] + p["shift"])

    def pad_k(w):
        return jnp.pad(w, ((0, fin_pad - w.shape[0]), (0, 0)))

    head = params["head"]
    return {
        "head": (pad_k(head["w_self"]), pad_k(head["w_neigh"]), head["b"]),
        "blocks": [(b["w_self"], b["w_neigh"], b["b"])
                   for b in params["blocks"]],
        "pool": fold(params["pool"]),
        "seg1": fold(params["seg1"]),
        "seg2": fold(params["seg2"]),
    }


def edge_index_to_adj(edge_index, num_nodes):
    """Dense row-normalized (mean-aggregation) adjacency from COO edges."""
    src, dst = edge_index[0], edge_index[1]
    adj = jnp.zeros((num_nodes, num_nodes), jnp.float32).at[dst, src].set(1.0)
    deg = jnp.clip(jnp.sum(adj, axis=1, keepdims=True), 1.0, None)
    return adj / deg


def reference_forward(params, x, adj, num_graphs):
    """Pure-JAX reference (unfolded params) for correctness checking."""
    def gconv(h, p):
        agg = adj @ h
        return jnp.maximum(h @ p["w_self"] + agg @ p["w_neigh"] + p["b"], 0.0)

    def linear(h, p, act):
        out = (h @ p["w"] + p["b"]) * p["scale"] + p["shift"]
        return jnp.maximum(out, 0.0) if act == "relu" else out

    h = gconv(x, params["head"])
    feats, cur = [h], h
    for blk in params["blocks"]:
        cur = gconv(cur, blk) + cur
        feats.append(cur)
    dense = jnp.concatenate(feats, axis=1)
    pooled = linear(dense, params["pool"], "relu")
    bn, pc = pooled.shape
    n = bn // num_graphs
    gmax = jnp.max(pooled.reshape(num_graphs, n, pc), axis=1, keepdims=True)
    x_g = jnp.broadcast_to(gmax, (num_graphs, n, pc)).reshape(bn, pc)
    xcat = jnp.concatenate([dense, x_g], axis=1)
    h1 = linear(xcat, params["seg1"], "relu")
    logits = linear(h1, params["seg2"], None)
    return jax.nn.log_softmax(logits, axis=1)


# ----------------------------------------------------------------------------
# main
# ----------------------------------------------------------------------------
if __name__ == "__main__":
    opt = dict(n_blocks=3, channels=32, pool_channels=32, in_feature=4,
               mlp_segment=[64], out_segment=4, adj_type="static",
               fusion_type="max", global_dilation=1)

    B, N = 2, 16                       # 2 sketches, 16 points each
    BN = B * N
    FIN_PAD = 8                        # pad head K-dim 4 -> 8

    key = jax.random.PRNGKey(0)
    k_par, k_x = jax.random.split(key)

    params = init_params(k_par, opt)
    x = jax.random.normal(k_x, (BN, opt["in_feature"]), jnp.float32)
    x_pad = jnp.pad(x, ((0, 0), (0, FIN_PAD - opt["in_feature"])))

    # one-line sketch graph: chain i <-> i+1 inside each sketch
    src, dst = [], []
    for b in range(B):
        off = b * N
        for i in range(N - 1):
            src += [off + i, off + i + 1]
            dst += [off + i + 1, off + i]
    edge_index = jnp.array([src, dst], dtype=jnp.int32)        # (2, 60)
    adj = edge_index_to_adj(edge_index, BN)                    # (BN, BN)

    prepped = prepare_params(params, FIN_PAD)

    fwd = jax.jit(functools.partial(sketch_one_line_forward,
                                    num_graphs=B, nodes_per_graph=N))
    out = jax.block_until_ready(fwd(prepped, x_pad, adj))

    ref = reference_forward(params, x, adj, B)

    assert out.shape == (BN, opt["out_segment"])
    assert bool(jnp.all(jnp.isfinite(out)))
    # log-softmax rows must exponentiate-sum to 1
    assert bool(jnp.allclose(jnp.sum(jnp.exp(out), axis=1), 1.0, atol=1e-4))
    # fused kernel matches the pure-JAX reference
    assert bool(jnp.allclose(out, ref, atol=1e-2, rtol=1e-2))
    print("KERNEL_OK")
</pallas_src>

<mosaic_0001>
module attributes {stable_mosaic.version = 11 : i64} {
  func.func @_fused_forward_kernel(%arg0: memref<32x32xf32, #tpu.memory_space<vmem>>, %arg1: memref<32x8xf32, #tpu.memory_space<vmem>>, %arg2: memref<8x32xf32, #tpu.memory_space<vmem>>, %arg3: memref<8x32xf32, #tpu.memory_space<vmem>>, %arg4: memref<1x32xf32, #tpu.memory_space<vmem>>, %arg5: memref<32x32xf32, #tpu.memory_space<vmem>>, %arg6: memref<32x32xf32, #tpu.memory_space<vmem>>, %arg7: memref<1x32xf32, #tpu.memory_space<vmem>>, %arg8: memref<32x32xf32, #tpu.memory_space<vmem>>, %arg9: memref<32x32xf32, #tpu.memory_space<vmem>>, %arg10: memref<1x32xf32, #tpu.memory_space<vmem>>, %arg11: memref<32x32xf32, #tpu.memory_space<vmem>>, %arg12: memref<32x32xf32, #tpu.memory_space<vmem>>, %arg13: memref<1x32xf32, #tpu.memory_space<vmem>>, %arg14: memref<128x32xf32, #tpu.memory_space<vmem>>, %arg15: memref<1x32xf32, #tpu.memory_space<vmem>>, %arg16: memref<160x64xf32, #tpu.memory_space<vmem>>, %arg17: memref<1x64xf32, #tpu.memory_space<vmem>>, %arg18: memref<64x4xf32, #tpu.memory_space<vmem>>, %arg19: memref<1x4xf32, #tpu.memory_space<vmem>>, %arg20: memref<32x4xf32, #tpu.memory_space<vmem>>, %arg21: memref<32x160xf32, #tpu.memory_space<vmem>>) attributes {dimension_semantics = [], scalar_prefetch = 0 : i64, scratch_operands = 1 : i64, tpu.core_type = #tpu.core_type<tc>} {
    %c0 = arith.constant 0 : index
    %c0_0 = arith.constant 0 : index
    %0 = vector.load %arg0[%c0, %c0_0] : memref<32x32xf32, #tpu.memory_space<vmem>>, vector<32x32xf32>
    %c0_1 = arith.constant 0 : index
    %c0_2 = arith.constant 0 : index
    %1 = vector.load %arg1[%c0_1, %c0_2] : memref<32x8xf32, #tpu.memory_space<vmem>>, vector<32x8xf32>
    %cst = arith.constant dense<0.000000e+00> : vector<32x8xf32>
    %2 = tpu.matmul %0, %1, %cst {dimension_numbers = #tpu.dot_dimension_numbers<[1], [0], [0], [1], [0, 0, 1, 1], [], []>} : vector<32x32xf32>, vector<32x8xf32>, vector<32x8xf32> -> vector<32x8xf32>
    %c0_3 = arith.constant 0 : index
    %c0_4 = arith.constant 0 : index
    %3 = vector.load %arg2[%c0_3, %c0_4] : memref<8x32xf32, #tpu.memory_space<vmem>>, vector<8x32xf32>
    %cst_5 = arith.constant dense<0.000000e+00> : vector<32x32xf32>
    %4 = tpu.matmul %1, %3, %cst_5 {dimension_numbers = #tpu.dot_dimension_numbers<[1], [0], [0], [1], [0, 0, 1, 1], [], []>} : vector<32x8xf32>, vector<8x32xf32>, vector<32x32xf32> -> vector<32x32xf32>
    %c0_6 = arith.constant 0 : index
    %c0_7 = arith.constant 0 : index
    %5 = vector.load %arg3[%c0_6, %c0_7] : memref<8x32xf32, #tpu.memory_space<vmem>>, vector<8x32xf32>
    %cst_8 = arith.constant dense<0.000000e+00> : vector<32x32xf32>
    %6 = tpu.matmul %2, %5, %cst_8 {dimension_numbers = #tpu.dot_dimension_numbers<[1], [0], [0], [1], [0, 0, 1, 1], [], []>} : vector<32x8xf32>, vector<8x32xf32>, vector<32x32xf32> -> vector<32x32xf32>
    %7 = arith.addf %4, %6 : vector<32x32xf32>
    %c0_9 = arith.constant 0 : index
    %c0_10 = arith.constant 0 : index
    %8 = vector.load %arg4[%c0_9, %c0_10] : memref<1x32xf32, #tpu.memory_space<vmem>>, vector<1x32xf32>
    %9 = vector.broadcast %8 : vector<1x32xf32> to vector<32x32xf32>
    %10 = arith.addf %7, %9 : vector<32x32xf32>
    %cst_11 = arith.constant 0.000000e+00 : f32
    %11 = vector.broadcast %cst_11 : f32 to vector<32x32xf32>
    %12 = arith.maximumf %10, %11 : vector<32x32xf32>
    %c0_12 = arith.constant 0 : index
    %c0_13 = arith.constant 0 : index
    %13 = vector.load %arg21[%c0_12, %c0_13] : memref<32x160xf32, #tpu.memory_space<vmem>>, vector<32x32xf32>
    tpu.vector_store %arg21[%c0_12, %c0_13], %12 {strides = array<i32>} : memref<32x160xf32, #tpu.memory_space<vmem>>, vector<32x32xf32>,
    %cst_14 = arith.constant dense<0.000000e+00> : vector<32x32xf32>
    %14 = tpu.matmul %0, %12, %cst_14 {dimension_numbers = #tpu.dot_dimension_numbers<[1], [0], [0], [1], [0, 0, 1, 1], [], []>} : vector<32x32xf32>, vector<32x32xf32>, vector<32x32xf32> -> vector<32x32xf32>
    %c0_15 = arith.constant 0 : index
    %c0_16 = arith.constant 0 : index
    %15 = vector.load %arg5[%c0_15, %c0_16] : memref<32x32xf32, #tpu.memory_space<vmem>>, vector<32x32xf32>
    %cst_17 = arith.constant dense<0.000000e+00> : vector<32x32xf32>
    %16 = tpu.matmul %12, %15, %cst_17 {dimension_numbers = #tpu.dot_dimension_numbers<[1], [0], [0], [1], [0, 0, 1, 1], [], []>} : vector<32x32xf32>, vector<32x32xf32>, vector<32x32xf32> -> vector<32x32xf32>
    %c0_18 = arith.constant 0 : index
    %c0_19 = arith.constant 0 : index
    %17 = vector.load %arg6[%c0_18, %c0_19] : memref<32x32xf32, #tpu.memory_space<vmem>>, vector<32x32xf32>
    %cst_20 = arith.constant dense<0.000000e+00> : vector<32x32xf32>
    %18 = tpu.matmul %14, %17, %cst_20 {dimension_numbers = #tpu.dot_dimension_numbers<[1], [0], [0], [1], [0, 0, 1, 1], [], []>} : vector<32x32xf32>, vector<32x32xf32>, vector<32x32xf32> -> vector<32x32xf32>
    %19 = arith.addf %16, %18 : vector<32x32xf32>
    %c0_21 = arith.constant 0 : index
    %c0_22 = arith.constant 0 : index
    %20 = vector.load %arg7[%c0_21, %c0_22] : memref<1x32xf32, #tpu.memory_space<vmem>>, vector<1x32xf32>
    %21 = vector.broadcast %20 : vector<1x32xf32> to vector<32x32xf32>
    %22 = arith.addf %19, %21 : vector<32x32xf32>
    %cst_23 = arith.constant 0.000000e+00 : f32
    %23 = vector.broadcast %cst_23 : f32 to vector<32x32xf32>
    %24 = arith.maximumf %22, %23 : vector<32x32xf32>
    %25 = arith.addf %24, %12 : vector<32x32xf32>
    %c0_24 = arith.constant 0 : index
    %c32 = arith.constant 32 : index
    %26 = vector.load %arg21[%c0_24, %c32] : memref<32x160xf32, #tpu.memory_space<vmem>>, vector<32x32xf32>
    tpu.vector_store %arg21[%c0_24, %c32], %25 {strides = array<i32>} : memref<32x160xf32, #tpu.memory_space<vmem>>, vector<32x32xf32>,
    %cst_25 = arith.constant dense<0.000000e+00> : vector<32x32xf32>
    %27 = tpu.matmul %0, %25, %cst_25 {dimension_numbers = #tpu.dot_dimension_numbers<[1], [0], [0], [1], [0, 0, 1, 1], [], []>} : vector<32x32xf32>, vector<32x32xf32>, vector<32x32xf32> -> vector<32x32xf32>
    %c0_26 = arith.constant 0 : index
    %c0_27 = arith.constant 0 : index
    %28 = vector.load %arg8[%c0_26, %c0_27] : memref<32x32xf32, #tpu.memory_space<vmem>>, vector<32x32xf32>
    %cst_28 = arith.constant dense<0.000000e+00> : vector<32x32xf32>
    %29 = tpu.matmul %25, %28, %cst_28 {dimension_numbers = #tpu.dot_dimension_numbers<[1], [0], [0], [1], [0, 0, 1, 1], [], []>} : vector<32x32xf32>, vector<32x32xf32>, vector<32x32xf32> -> vector<32x32xf32>
    %c0_29 = arith.constant 0 : index
    %c0_30 = arith.constant 0 : index
    %30 = vector.load %arg9[%c0_29, %c0_30] : memref<32x32xf32, #tpu.memory_space<vmem>>, vector<32x32xf32>
    %cst_31 = arith.constant dense<0.000000e+00> : vector<32x32xf32>
    %31 = tpu.matmul %27, %30, %cst_31 {dimension_numbers = #tpu.dot_dimension_numbers<[1], [0], [0], [1], [0, 0, 1, 1], [], []>} : vector<32x32xf32>, vector<32x32xf32>, vector<32x32xf32> -> vector<32x32xf32>
    %32 = arith.addf %29, %31 : vector<32x32xf32>
    %c0_32 = arith.constant 0 : index
    %c0_33 = arith.constant 0 : index
    %33 = vector.load %arg10[%c0_32, %c0_33] : memref<1x32xf32, #tpu.memory_space<vmem>>, vector<1x32xf32>
    %34 = vector.broadcast %33 : vector<1x32xf32> to vector<32x32xf32>
    %35 = arith.addf %32, %34 : vector<32x32xf32>
    %cst_34 = arith.constant 0.000000e+00 : f32
    %36 = vector.broadcast %cst_34 : f32 to vector<32x32xf32>
    %37 = arith.maximumf %35, %36 : vector<32x32xf32>
    %38 = arith.addf %37, %25 : vector<32x32xf32>
    %c0_35 = arith.constant 0 : index
    %c64 = arith.constant 64 : index
    %39 = vector.load %arg21[%c0_35, %c64] : memref<32x160xf32, #tpu.memory_space<vmem>>, vector<32x32xf32>
    tpu.vector_store %arg21[%c0_35, %c64], %38 {strides = array<i32>} : memref<32x160xf32, #tpu.memory_space<vmem>>, vector<32x32xf32>,
    %cst_36 = arith.constant dense<0.000000e+00> : vector<32x32xf32>
    %40 = tpu.matmul %0, %38, %cst_36 {dimension_numbers = #tpu.dot_dimension_numbers<[1], [0], [0], [1], [0, 0, 1, 1], [], []>} : vector<32x32xf32>, vector<32x32xf32>, vector<32x32xf32> -> vector<32x32xf32>
    %c0_37 = arith.constant 0 : index
    %c0_38 = arith.constant 0 : index
    %41 = vector.load %arg11[%c0_37, %c0_38] : memref<32x32xf32, #tpu.memory_space<vmem>>, vector<32x32xf32>
    %cst_39 = arith.constant dense<0.000000e+00> : vector<32x32xf32>
    %42 = tpu.matmul %38, %41, %cst_39 {dimension_numbers = #tpu.dot_dimension_numbers<[1], [0], [0], [1], [0, 0, 1, 1], [], []>} : vector<32x32xf32>, vector<32x32xf32>, vector<32x32xf32> -> vector<32x32xf32>
    %c0_40 = arith.constant 0 : index
    %c0_41 = arith.constant 0 : index
    %43 = vector.load %arg12[%c0_40, %c0_41] : memref<32x32xf32, #tpu.memory_space<vmem>>, vector<32x32xf32>
    %cst_42 = arith.constant dense<0.000000e+00> : vector<32x32xf32>
    %44 = tpu.matmul %40, %43, %cst_42 {dimension_numbers = #tpu.dot_dimension_numbers<[1], [0], [0], [1], [0, 0, 1, 1], [], []>} : vector<32x32xf32>, vector<32x32xf32>, vector<32x32xf32> -> vector<32x32xf32>
    %45 = arith.addf %42, %44 : vector<32x32xf32>
    %c0_43 = arith.constant 0 : index
    %c0_44 = arith.constant 0 : index
    %46 = vector.load %arg13[%c0_43, %c0_44] : memref<1x32xf32, #tpu.memory_space<vmem>>, vector<1x32xf32>
    %47 = vector.broadcast %46 : vector<1x32xf32> to vector<32x32xf32>
    %48 = arith.addf %45, %47 : vector<32x32xf32>
    %cst_45 = arith.constant 0.000000e+00 : f32
    %49 = vector.broadcast %cst_45 : f32 to vector<32x32xf32>
    %50 = arith.maximumf %48, %49 : vector<32x32xf32>
    %51 = arith.addf %50, %38 : vector<32x32xf32>
    %c0_46 = arith.constant 0 : index
    %c96 = arith.constant 96 : index
    %52 = vector.load %arg21[%c0_46, %c96] : memref<32x160xf32, #tpu.memory_space<vmem>>, vector<32x32xf32>
    tpu.vector_store %arg21[%c0_46, %c96], %51 {strides = array<i32>} : memref<32x160xf32, #tpu.memory_space<vmem>>, vector<32x32xf32>,
    %c0_47 = arith.constant 0 : index
    %c0_48 = arith.constant 0 : index
    %53 = vector.load %arg21[%c0_47, %c0_48] : memref<32x160xf32, #tpu.memory_space<vmem>>, vector<32x128xf32>
    %c0_49 = arith.constant 0 : index
    %c0_50 = arith.constant 0 : index
    %54 = vector.load %arg14[%c0_49, %c0_50] : memref<128x32xf32, #tpu.memory_space<vmem>>, vector<128x32xf32>
    %cst_51 = arith.constant dense<0.000000e+00> : vector<32x32xf32>
    %55 = tpu.matmul %53, %54, %cst_51 {dimension_numbers = #tpu.dot_dimension_numbers<[1], [0], [0], [1], [0, 0, 1, 1], [], []>} : vector<32x128xf32>, vector<128x32xf32>, vector<32x32xf32> -> vector<32x32xf32>
    %c0_52 = arith.constant 0 : index
    %c0_53 = arith.constant 0 : index
    %56 = vector.load %arg15[%c0_52, %c0_53] : memref<1x32xf32, #tpu.memory_space<vmem>>, vector<1x32xf32>
    %57 = vector.broadcast %56 : vector<1x32xf32> to vector<32x32xf32>
    %58 = arith.addf %55, %57 : vector<32x32xf32>
    %cst_54 = arith.constant 0.000000e+00 : f32
    %59 = vector.broadcast %cst_54 : f32 to vector<32x32xf32>
    %60 = arith.maximumf %58, %59 : vector<32x32xf32>
    %61 = vector.extract_strided_slice %60 {offsets = [0, 0], sizes = [16, 32], strides = [1, 1]} : vector<32x32xf32> to vector<16x32xf32>
    %cst_55 = arith.constant dense<0xFF800000> : vector<32xf32>
    %62 = vector.multi_reduction <maximumf>, %61, %cst_55 [0] : vector<16x32xf32> to vector<32xf32>
    %63 = vector.shape_cast %62 : vector<32xf32> to vector<1x32xf32>
    %64 = vector.shape_cast %63 : vector<1x32xf32> to vector<1x32xf32>
    %65 = vector.broadcast %64 : vector<1x32xf32> to vector<16x32xf32>
    %c0_56 = arith.constant 0 : index
    %c128 = arith.constant 128 : index
    %66 = vector.load %arg21[%c0_56, %c128] : memref<32x160xf32, #tpu.memory_space<vmem>>, vector<16x32xf32>
    tpu.vector_store %arg21[%c0_56, %c128], %65 {strides = array<i32>} : memref<32x160xf32, #tpu.memory_space<vmem>>, vector<16x32xf32>,
    %67 = vector.extract_strided_slice %60 {offsets = [16, 0], sizes = [16, 32], strides = [1, 1]} : vector<32x32xf32> to vector<16x32xf32>
    %cst_57 = arith.constant dense<0xFF800000> : vector<32xf32>
    %68 = vector.multi_reduction <maximumf>, %67, %cst_57 [0] : vector<16x32xf32> to vector<32xf32>
    %69 = vector.shape_cast %68 : vector<32xf32> to vector<1x32xf32>
    %70 = vector.shape_cast %69 : vector<1x32xf32> to vector<1x32xf32>
    %71 = vector.broadcast %70 : vector<1x32xf32> to vector<16x32xf32>
    %c16 = arith.constant 16 : index
    %c128_58 = arith.constant 128 : index
    %72 = vector.load %arg21[%c16, %c128_58] : memref<32x160xf32, #tpu.memory_space<vmem>>, vector<16x32xf32>
    tpu.vector_store %arg21[%c16, %c128_58], %71 {strides = array<i32>} : memref<32x160xf32, #tpu.memory_space<vmem>>, vector<16x32xf32>,
    %c0_59 = arith.constant 0 : index
    %c0_60 = arith.constant 0 : index
    %73 = vector.load %arg21[%c0_59, %c0_60] : memref<32x160xf32, #tpu.memory_space<vmem>>, vector<32x160xf32>
    %c0_61 = arith.constant 0 : index
    %c0_62 = arith.constant 0 : index
    %74 = vector.load %arg16[%c0_61, %c0_62] : memref<160x64xf32, #tpu.memory_space<vmem>>, vector<160x64xf32>
    %cst_63 = arith.constant dense<0.000000e+00> : vector<32x64xf32>
    %75 = tpu.matmul %73, %74, %cst_63 {dimension_numbers = #tpu.dot_dimension_numbers<[1], [0], [0], [1], [0, 0, 1, 1], [], []>} : vector<32x160xf32>, vector<160x64xf32>, vector<32x64xf32> -> vector<32x64xf32>
    %c0_64 = arith.constant 0 : index
    %c0_65 = arith.constant 0 : index
    %76 = vector.load %arg17[%c0_64, %c0_65] : memref<1x64xf32, #tpu.memory_space<vmem>>, vector<1x64xf32>
    %77 = vector.broadcast %76 : vector<1x64xf32> to vector<32x64xf32>
    %78 = arith.addf %75, %77 : vector<32x64xf32>
    %cst_66 = arith.constant 0.000000e+00 : f32
    %79 = vector.broadcast %cst_66 : f32 to vector<32x64xf32>
    %80 = arith.maximumf %78, %79 : vector<32x64xf32>
    %c0_67 = arith.constant 0 : index
    %c0_68 = arith.constant 0 : index
    %81 = vector.load %arg18[%c0_67, %c0_68] : memref<64x4xf32, #tpu.memory_space<vmem>>, vector<64x4xf32>
    %cst_69 = arith.constant dense<0.000000e+00> : vector<32x4xf32>
    %82 = tpu.matmul %80, %81, %cst_69 {dimension_numbers = #tpu.dot_dimension_numbers<[1], [0], [0], [1], [0, 0, 1, 1], [], []>} : vector<32x64xf32>, vector<64x4xf32>, vector<32x4xf32> -> vector<32x4xf32>
    %c0_70 = arith.constant 0 : index
    %c0_71 = arith.constant 0 : index
    %83 = vector.load %arg19[%c0_70, %c0_71] : memref<1x4xf32, #tpu.memory_space<vmem>>, vector<1x4xf32>
    %84 = vector.broadcast %83 : vector<1x4xf32> to vector<32x4xf32>
    %85 = arith.addf %82, %84 : vector<32x4xf32>
    %cst_72 = arith.constant dense<0xFF800000> : vector<32xf32>
    %86 = vector.multi_reduction <maximumf>, %85, %cst_72 [1] : vector<32x4xf32> to vector<32xf32>
    %87 = vector.shape_cast %86 : vector<32xf32> to vector<32x1xf32>
    %88 = vector.broadcast %87 : vector<32x1xf32> to vector<32x4xf32>
    %89 = arith.subf %85, %88 : vector<32x4xf32>
    %90 = math.exp %89 : vector<32x4xf32>
    %cst_73 = arith.constant dense<0.000000e+00> : vector<32xf32>
    %91 = vector.multi_reduction <add>, %90, %cst_73 [1] : vector<32x4xf32> to vector<32xf32>
    %92 = vector.shape_cast %91 : vector<32xf32> to vector<32x1xf32>
    %93 = math.log %92 : vector<32x1xf32>
    %94 = vector.broadcast %93 : vector<32x1xf32> to vector<32x4xf32>
    %95 = arith.subf %89, %94 : vector<32x4xf32>
    %c0_74 = arith.constant 0 : index
    %c0_75 = arith.constant 0 : index
    %96 = vector.load %arg20[%c0_74, %c0_75] : memref<32x4xf32, #tpu.memory_space<vmem>>, vector<32x4xf32>
    tpu.vector_store %arg20[%c0_74, %c0_75], %95 {strides = array<i32>} : memref<32x4xf32, #tpu.memory_space<vmem>>, vector<32x4xf32>,
    return
  }
}

</mosaic_0001>

<llo_original>
// kernel: sketch_one_line_forward.1
$region0: #{sketch_one_line_forward.1}
  #allocation0 [shape = 'u32[]', space=smem, size = 0x4, offset = 0x4, fixed_abs, tag = 'smem constant byte address 0x4 - core index']
  #allocation1 [shape = 'u32[72,128]{1,0:T(1,128)}', space=vmem, size = 0x9000, scoped, tag = 'internal scratch']
  #allocation2 [shape = 'f32[32,160]{1,0:T(8,128)}', space=vmem, size = 0x8000, scoped, tag = 'scratch operand']
  %s0 = inlined_call_operand.vmem [shape: f32[32,32], index: 0, kind: input, shape index: {}]
  %s1 = inlined_call_operand.vmem [shape: f32[32,8], index: 1, kind: input, shape index: {}]
  %s2 = inlined_call_operand.vmem [shape: f32[8,32], index: 2, kind: input, shape index: {}]
  %s3 = inlined_call_operand.vmem [shape: f32[8,32], index: 3, kind: input, shape index: {}]
  %s4 = inlined_call_operand.vmem [shape: f32[1,32], index: 4, kind: input, shape index: {}]
  %s5 = inlined_call_operand.vmem [shape: f32[32,32], index: 5, kind: input, shape index: {}]
  %s6 = inlined_call_operand.vmem [shape: f32[32,32], index: 6, kind: input, shape index: {}]
  %s7 = inlined_call_operand.vmem [shape: f32[1,32], index: 7, kind: input, shape index: {}]
  %s8 = inlined_call_operand.vmem [shape: f32[32,32], index: 8, kind: input, shape index: {}]
  %s9 = inlined_call_operand.vmem [shape: f32[32,32], index: 9, kind: input, shape index: {}]
  %s10 = inlined_call_operand.vmem [shape: f32[1,32], index: 10, kind: input, shape index: {}]
  %s11 = inlined_call_operand.vmem [shape: f32[32,32], index: 11, kind: input, shape index: {}]
  %s12 = inlined_call_operand.vmem [shape: f32[32,32], index: 12, kind: input, shape index: {}]
  %s13 = inlined_call_operand.vmem [shape: f32[1,32], index: 13, kind: input, shape index: {}]
  %s14 = inlined_call_operand.vmem [shape: f32[128,32], index: 14, kind: input, shape index: {}]
  %s15 = inlined_call_operand.vmem [shape: f32[1,32], index: 15, kind: input, shape index: {}]
  %s16 = inlined_call_operand.vmem [shape: f32[160,64], index: 16, kind: input, shape index: {}]
  %s17 = inlined_call_operand.vmem [shape: f32[1,64], index: 17, kind: input, shape index: {}]
  %s18 = inlined_call_operand.vmem [shape: f32[64,4], index: 18, kind: input, shape index: {}]
  %s19 = inlined_call_operand.vmem [shape: f32[1,4], index: 19, kind: input, shape index: {}]
  %s20 = inlined_call_operand.vmem [shape: f32[32,4], index: 20, kind: output, shape index: {}]
  %s21 = sld [smem:[#allocation0]]
  $region90: #{sketch_one_line_forward.1} parent=0
    _
  %s23 = ssub.s32 1, %s21
  %s24 = scalar_select 0, %s23, %s21
  // Predicated region
  $region2: #{sketch_one_line_forward.1} parent=0 // pred_check
    _
  $region3: #{sketch_one_line_forward.1} parent=0 // pred_check_branch
    %26 = sbr.rel (0) target = $region5
  $region4: #{sketch_one_line_forward.1} parent=0 // pred_region
    _
  $region5: #{sketch_one_line_forward.1} parent=0 // pred_fallthru
    _
  // Predicated region
  $region6: #{sketch_one_line_forward.1} parent=0 // pred_check
    _
  $region7: #{sketch_one_line_forward.1} parent=0 // pred_check_branch
    %28 = sbr.rel (0) target = $region9
  $region8: #{sketch_one_line_forward.1} parent=0 // pred_region
    _
  $region9: #{sketch_one_line_forward.1} parent=0 // pred_fallthru
    _
  // Predicated region
  $region10: #{sketch_one_line_forward.1} parent=0 // pred_check
    _
  $region11: #{sketch_one_line_forward.1} parent=0 // pred_check_branch
    %30 = sbr.rel (0) target = $region13
  $region12: #{sketch_one_line_forward.1} parent=0 // pred_region
    _
  $region13: #{sketch_one_line_forward.1} parent=0 // pred_fallthru
    _
  // Predicated region
  $region14: #{sketch_one_line_forward.1} parent=0 // pred_check
    _
  $region15: #{sketch_one_line_forward.1} parent=0 // pred_check_branch
    %32 = sbr.rel (0) target = $region17
  $region16: #{sketch_one_line_forward.1} parent=0 // pred_region
    _
  $region17: #{sketch_one_line_forward.1} parent=0 // pred_fallthru
    _
  // Predicated region
  $region18: #{sketch_one_line_forward.1} parent=0 // pred_check
    _
  $region19: #{sketch_one_line_forward.1} parent=0 // pred_check_branch
    %34 = sbr.rel (0) target = $region21
  $region20: #{sketch_one_line_forward.1} parent=0 // pred_region
    _
  $region21: #{sketch_one_line_forward.1} parent=0 // pred_fallthru
    _
  // Predicated region
  $region22: #{sketch_one_line_forward.1} parent=0 // pred_check
    _
  $region23: #{sketch_one_line_forward.1} parent=0 // pred_check_branch
    %36 = sbr.rel (0) target = $region25
  $region24: #{sketch_one_line_forward.1} parent=0 // pred_region
    _
  $region25: #{sketch_one_line_forward.1} parent=0 // pred_fallthru
    _
  // Predicated region
  $region26: #{sketch_one_line_forward.1} parent=0 // pred_check
    _
  $region27: #{sketch_one_line_forward.1} parent=0 // pred_check_branch
    %38 = sbr.rel (0) target = $region29
  $region28: #{sketch_one_line_forward.1} parent=0 // pred_region
    _
  $region29: #{sketch_one_line_forward.1} parent=0 // pred_fallthru
    _
  // Predicated region
  $region30: #{sketch_one_line_forward.1} parent=0 // pred_check
    _
  $region31: #{sketch_one_line_forward.1} parent=0 // pred_check_branch
    %40 = sbr.rel (0) target = $region33
  $region32: #{sketch_one_line_forward.1} parent=0 // pred_region
    _
  $region33: #{sketch_one_line_forward.1} parent=0 // pred_fallthru
    _
  // Predicated region
  $region34: #{sketch_one_line_forward.1} parent=0 // pred_check
    _
  $region35: #{sketch_one_line_forward.1} parent=0 // pred_check_branch
    %42 = sbr.rel (0) target = $region37
  $region36: #{sketch_one_line_forward.1} parent=0 // pred_region
    _
  $region37: #{sketch_one_line_forward.1} parent=0 // pred_fallthru
    _
  // Predicated region
  $region38: #{sketch_one_line_forward.1} parent=0 // pred_check
    _
  $region39: #{sketch_one_line_forward.1} parent=0 // pred_check_branch
    %44 = sbr.rel (0) target = $region41
  $region40: #{sketch_one_line_forward.1} parent=0 // pred_region
    _
  $region41: #{sketch_one_line_forward.1} parent=0 // pred_fallthru
    _
  // Predicated region
  $region42: #{sketch_one_line_forward.1} parent=0 // pred_check
    _
  $region43: #{sketch_one_line_forward.1} parent=0 // pred_check_branch
    %46 = sbr.rel (0) target = $region45
  $region44: #{sketch_one_line_forward.1} parent=0 // pred_region
    _
  $region45: #{sketch_one_line_forward.1} parent=0 // pred_fallthru
    _
  // Predicated region
  $region46: #{sketch_one_line_forward.1} parent=0 // pred_check
    _
  $region47: #{sketch_one_line_forward.1} parent=0 // pred_check_branch
    %48 = sbr.rel (0) target = $region49
  $region48: #{sketch_one_line_forward.1} parent=0 // pred_region
    _
  $region49: #{sketch_one_line_forward.1} parent=0 // pred_fallthru
    _
  // Predicated region
  $region50: #{sketch_one_line_forward.1} parent=0 // pred_check
    _
  $region51: #{sketch_one_line_forward.1} parent=0 // pred_check_branch
    %50 = sbr.rel (0) target = $region53
  $region52: #{sketch_one_line_forward.1} parent=0 // pred_region
    _
  $region53: #{sketch_one_line_forward.1} parent=0 // pred_fallthru
    _
  // Predicated region
  $region54: #{sketch_one_line_forward.1} parent=0 // pred_check
    _
  $region55: #{sketch_one_line_forward.1} parent=0 // pred_check_branch
    %52 = sbr.rel (0) target = $region57
  $region56: #{sketch_one_line_forward.1} parent=0 // pred_region
    _
  $region57: #{sketch_one_line_forward.1} parent=0 // pred_fallthru
    _
  // Predicated region
  $region58: #{sketch_one_line_forward.1} parent=0 // pred_check
    _
  $region59: #{sketch_one_line_forward.1} parent=0 // pred_check_branch
    %54 = sbr.rel (0) target = $region61
  $region60: #{sketch_one_line_forward.1} parent=0 // pred_region
    _
  $region61: #{sketch_one_line_forward.1} parent=0 // pred_fallthru
    _
  // Predicated region
  $region62: #{sketch_one_line_forward.1} parent=0 // pred_check
    _
  $region63: #{sketch_one_line_forward.1} parent=0 // pred_check_branch
    %56 = sbr.rel (0) target = $region65
  $region64: #{sketch_one_line_forward.1} parent=0 // pred_region
    _
  $region65: #{sketch_one_line_forward.1} parent=0 // pred_fallthru
    _
  // Predicated region
  $region66: #{sketch_one_line_forward.1} parent=0 // pred_check
    _
  $region67: #{sketch_one_line_forward.1} parent=0 // pred_check_branch
    %58 = sbr.rel (0) target = $region69
  $region68: #{sketch_one_line_forward.1} parent=0 // pred_region
    _
  $region69: #{sketch_one_line_forward.1} parent=0 // pred_fallthru
    _
  // Predicated region
  $region70: #{sketch_one_line_forward.1} parent=0 // pred_check
    _
  $region71: #{sketch_one_line_forward.1} parent=0 // pred_check_branch
    %60 = sbr.rel (0) target = $region73
  $region72: #{sketch_one_line_forward.1} parent=0 // pred_region
    _
  $region73: #{sketch_one_line_forward.1} parent=0 // pred_fallthru
    _
  // Predicated region
  $region74: #{sketch_one_line_forward.1} parent=0 // pred_check
    _
  $region75: #{sketch_one_line_forward.1} parent=0 // pred_check_branch
    %62 = sbr.rel (0) target = $region77
  $region76: #{sketch_one_line_forward.1} parent=0 // pred_region
    _
  $region77: #{sketch_one_line_forward.1} parent=0 // pred_fallthru
    _
  // Predicated region
  $region78: #{sketch_one_line_forward.1} parent=0 // pred_check
    _
  $region79: #{sketch_one_line_forward.1} parent=0 // pred_check_branch
    %64 = sbr.rel (0) target = $region81
  $region80: #{sketch_one_line_forward.1} parent=0 // pred_region
    _
  $region81: #{sketch_one_line_forward.1} parent=0 // pred_fallthru
    _
  %v65 = vld [vmem:[%s0] sm:$0xff]
  %v66 = vld [vmem:[%s0 + $0x8] sm:$0xff]
  %v67 = vld [vmem:[%s0 + $0x10] sm:$0xff]
  %v68 = vld [vmem:[%s0 + $0x18] sm:$0xff]
  %v69 = vld [vmem:[%s1] sm:$0xff]
  %v70 = vld [vmem:[%s1 + $0x8] sm:$0xff]
  %v71 = vld [vmem:[%s1 + $0x10] sm:$0xff]
  %v72 = vld [vmem:[%s1 + $0x18] sm:$0xff]
  %vm73 = vcmask 261120
  %v75 = vsel %vm73, %v65, 0
  %v78 = vsel %vm73, %v66, 0
  %v81 = vsel %vm73, %v67, 0
  %v84 = vsel %vm73, %v68, 0
  %86 = vmatpush.msra.mxu0 0.0
  %87 = vmatpush.msra.mxu0 0.0
  %88 = vmatpush.msra.mxu0 0.0
  %89 = vmatpush.msra.mxu0 0.0
  %90 = vmatpush.msra.mxu0 0.0
  %91 = vmatpush.msra.mxu0 0.0
  %92 = vmatpush.msra.mxu0 0.0
  %93 = vmatpush.msra.mxu0 0.0
  %94 = vmatpush.msra.mxu0 0.0
  %95 = vmatpush.msra.mxu0 0.0
  %96 = vmatpush.msra.mxu0 0.0
  %97 = vmatpush.msra.mxu0 0.0
  %98 = vmatpush.msra.mxu0 %v72
  %99 = vmatpush.msra.mxu0 %v71
  %100 = vmatpush.msra.mxu0 %v70
  %101 = vmatpush.msra.mxu0 %v69
  %102 = vmatmul.f32.gmra.mxu0 %v75
  %v103 = vpop.f32.mrf.mxu0
  %v104 = vadd.f32 0.0, %v103
  %105 = vmatmul.f32.gmra.mxu0 %v78
  %v106 = vpop.f32.mrf.mxu0
  %v107 = vadd.f32 0.0, %v106
  %108 = vmatmul.f32.gmra.mxu0 %v81
  %v109 = vpop.f32.mrf.mxu0
  %v110 = vadd.f32 0.0, %v109
  %111 = vmatmul.f32.gmra.mxu0 %v84
  %v112 = vpop.f32.mrf.mxu0
  %v113 = vadd.f32 0.0, %v112
  %114 = vdwg.mxu0
  %v115 = vld [vmem:[%s2] sm:$0xff]
  %v116 = vld [vmem:[%s3] sm:$0xff]
  %vm117 = vcmask 64512
  %v119 = vsel %vm117, %v104, 0
  %v122 = vsel %vm117, %v107, 0
  %v125 = vsel %vm117, %v110, 0
  %v128 = vsel %vm117, %v113, 0
  %130 = vmatpush.msra.mxu0 0.0
  %131 = vmatpush.msra.mxu0 0.0
  %132 = vmatpush.msra.mxu0 0.0
  %133 = vmatpush.msra.mxu0 0.0
  %134 = vmatpush.msra.mxu0 0.0
  %135 = vmatpush.msra.mxu0 0.0
  %136 = vmatpush.msra.mxu0 0.0
  %137 = vmatpush.msra.mxu0 0.0
  %138 = vmatpush.msra.mxu0 0.0
  %139 = vmatpush.msra.mxu0 0.0
  %140 = vmatpush.msra.mxu0 0.0
  %141 = vmatpush.msra.mxu0 0.0
  %142 = vmatpush.msra.mxu0 0.0
  %143 = vmatpush.msra.mxu0 0.0
  %144 = vmatpush.msra.mxu0 0.0
  %145 = vmatpush.msra.mxu0 %v116
  %146 = vmatmul.f32.gmra.mxu0 %v119
  %v147 = vpop.f32.mrf.mxu0
  %v148 = vadd.f32 0.0, %v147
  %149 = vmatmul.f32.gmra.mxu0 %v122
  %v150 = vpop.f32.mrf.mxu0
  %v151 = vadd.f32 0.0, %v150
  %152 = vmatmul.f32.gmra.mxu0 %v125
  %v153 = vpop.f32.mrf.mxu0
  %v154 = vadd.f32 0.0, %v153
  %155 = vmatmul.f32.gmra.mxu0 %v128
  %v156 = vpop.f32.mrf.mxu0
  %v157 = vadd.f32 0.0, %v156
  %158 = vdwg.mxu0
  %v160 = vsel %vm117, %v69, 0
  %v163 = vsel %vm117, %v70, 0
  %v166 = vsel %vm117, %v71, 0
  %v169 = vsel %vm117, %v72, 0
  %171 = vmatpush.msra.mxu0 0.0
  %172 = vmatpush.msra.mxu0 0.0
  %173 = vmatpush.msra.mxu0 0.0
  %174 = vmatpush.msra.mxu0 0.0
  %175 = vmatpush.msra.mxu0 0.0
  %176 = vmatpush.msra.mxu0 0.0
  %177 = vmatpush.msra.mxu0 0.0
  %178 = vmatpush.msra.mxu0 0.0
  %179 = vmatpush.msra.mxu0 0.0
  %180 = vmatpush.msra.mxu0 0.0
  %181 = vmatpush.msra.mxu0 0.0
  %182 = vmatpush.msra.mxu0 0.0
  %183 = vmatpush.msra.mxu0 0.0
  %184 = vmatpush.msra.mxu0 0.0
  %185 = vmatpush.msra.mxu0 0.0
  %186 = vmatpush.msra.mxu0 %v115
  %187 = vmatmul.f32.gmra.mxu0 %v160
  %v188 = vpop.f32.mrf.mxu0
  %v189 = vadd.f32 %v148, %v188
  %190 = vmatmul.f32.gmra.mxu0 %v163
  %v191 = vpop.f32.mrf.mxu0
  %v192 = vadd.f32 %v151, %v191
  %193 = vmatmul.f32.gmra.mxu0 %v166
  %v194 = vpop.f32.mrf.mxu0
  %v195 = vadd.f32 %v154, %v194
  %196 = vmatmul.f32.gmra.mxu0 %v169
  %v197 = vpop.f32.mrf.mxu0
  %v198 = vadd.f32 %v157, %v197
  %199 = vdwg.mxu0
  %v200 = vld [vmem:[%s4] sm:$0x1]
  %v202 = vperm.slane %v200, 0
  %v204 = vadd.f32 %v189, %v202
  %v205 = vadd.f32 %v192, %v202
  %v206 = vadd.f32 %v195, %v202
  %v207 = vadd.f32 %v198, %v202
  %v208 = vmax.f32 %v204, 0.0
  %v209 = vmax.f32 %v205, 0.0
  %v210 = vmax.f32 %v206, 0.0
  %v211 = vmax.f32 %v207, 0.0
  %212 = vst.msk [vmem:[#allocation2] sm:$0xff] %vm73, %v208
  %213 = vst.msk [vmem:[#allocation2 + $0x10] sm:$0xff] %vm73, %v209
  %214 = vst.msk [vmem:[#allocation2 + $0x20] sm:$0xff] %vm73, %v210
  %215 = vst.msk [vmem:[#allocation2 + $0x30] sm:$0xff] %vm73, %v211
  %216 = vmatpush.msra.mxu0 0.0
  %217 = vmatpush.msra.mxu0 0.0
  %218 = vmatpush.msra.mxu0 0.0
  %219 = vmatpush.msra.mxu0 0.0
  %220 = vmatpush.msra.mxu0 0.0
  %221 = vmatpush.msra.mxu0 0.0
  %222 = vmatpush.msra.mxu0 0.0
  %223 = vmatpush.msra.mxu0 0.0
  %224 = vmatpush.msra.mxu0 0.0
  %225 = vmatpush.msra.mxu0 0.0
  %226 = vmatpush.msra.mxu0 0.0
  %227 = vmatpush.msra.mxu0 0.0
  %228 = vmatpush.msra.mxu0 %v211
  %229 = vmatpush.msra.mxu0 %v210
  %230 = vmatpush.msra.mxu0 %v209
  %231 = vmatpush.msra.mxu0 %v208
  %232 = vmatmul.f32.gmra.mxu0 %v75
  %v233 = vpop.f32.mrf.mxu0
  %v234 = vadd.f32 0.0, %v233
  %235 = vmatmul.f32.gmra.mxu0 %v78
  %v236 = vpop.f32.mrf.mxu0
  %v237 = vadd.f32 0.0, %v236
  %238 = vmatmul.f32.gmra.mxu0 %v81
  %v239 = vpop.f32.mrf.mxu0
  %v240 = vadd.f32 0.0, %v239
  %241 = vmatmul.f32.gmra.mxu0 %v84
  %v242 = vpop.f32.mrf.mxu0
  %v243 = vadd.f32 0.0, %v242
  %244 = vdwg.mxu0
  %v245 = vld [vmem:[%s5] sm:$0xff]
  %v246 = vld [vmem:[%s5 + $0x8] sm:$0xff]
  %v247 = vld [vmem:[%s5 + $0x10] sm:$0xff]
  %v248 = vld [vmem:[%s5 + $0x18] sm:$0xff]
  %v249 = vld [vmem:[%s6] sm:$0xff]
  %v250 = vld [vmem:[%s6 + $0x8] sm:$0xff]
  %v251 = vld [vmem:[%s6 + $0x10] sm:$0xff]
  %v252 = vld [vmem:[%s6 + $0x18] sm:$0xff]
  %v254 = vsel %vm73, %v234, 0
  %v257 = vsel %vm73, %v237, 0
  %v260 = vsel %vm73, %v240, 0
  %v263 = vsel %vm73, %v243, 0
  %265 = vmatpush.msra.mxu0 0.0
  %266 = vmatpush.msra.mxu0 0.0
  %267 = vmatpush.msra.mxu0 0.0
  %268 = vmatpush.msra.mxu0 0.0
  %269 = vmatpush.msra.mxu0 0.0
  %270 = vmatpush.msra.mxu0 0.0
  %271 = vmatpush.msra.mxu0 0.0
  %272 = vmatpush.msra.mxu0 0.0
  %273 = vmatpush.msra.mxu0 0.0
  %274 = vmatpush.msra.mxu0 0.0
  %275 = vmatpush.msra.mxu0 0.0
  %276 = vmatpush.msra.mxu0 0.0
  %277 = vmatpush.msra.mxu0 %v252
  %278 = vmatpush.msra.mxu0 %v251
  %279 = vmatpush.msra.mxu0 %v250
  %280 = vmatpush.msra.mxu0 %v249
  %281 = vmatmul.f32.gmra.mxu0 %v254
  %v282 = vpop.f32.mrf.mxu0
  %v283 = vadd.f32 0.0, %v282
  %284 = vmatmul.f32.gmra.mxu0 %v257
  %v285 = vpop.f32.mrf.mxu0
  %v286 = vadd.f32 0.0, %v285
  %287 = vmatmul.f32.gmra.mxu0 %v260
  %v288 = vpop.f32.mrf.mxu0
  %v289 = vadd.f32 0.0, %v288
  %290 = vmatmul.f32.gmra.mxu0 %v263
  %v291 = vpop.f32.mrf.mxu0
  %v292 = vadd.f32 0.0, %v291
  %293 = vdwg.mxu0
  %v295 = vsel %vm73, %v208, 0
  %v298 = vsel %vm73, %v209, 0
  %v301 = vsel %vm73, %v210, 0
  %v304 = vsel %vm73, %v211, 0
  %306 = vmatpush.msra.mxu0 0.0
  %307 = vmatpush.msra.mxu0 0.0
  %308 = vmatpush.msra.mxu0 0.0
  %309 = vmatpush.msra.mxu0 0.0
  %310 = vmatpush.msra.mxu0 0.0
  %311 = vmatpush.msra.mxu0 0.0
  %312 = vmatpush.msra.mxu0 0.0
  %313 = vmatpush.msra.mxu0 0.0
  %314 = vmatpush.msra.mxu0 0.0
  %315 = vmatpush.msra.mxu0 0.0
  %316 = vmatpush.msra.mxu0 0.0
  %317 = vmatpush.msra.mxu0 0.0
  %318 = vmatpush.msra.mxu0 %v248
  %319 = vmatpush.msra.mxu0 %v247
  %320 = vmatpush.msra.mxu0 %v246
  %321 = vmatpush.msra.mxu0 %v245
  %322 = vmatmul.f32.gmra.mxu0 %v295
  %v323 = vpop.f32.mrf.mxu0
  %v324 = vadd.f32 %v283, %v323
  %325 = vmatmul.f32.gmra.mxu0 %v298
  %v326 = vpop.f32.mrf.mxu0
  %v327 = vadd.f32 %v286, %v326
  %328 = vmatmul.f32.gmra.mxu0 %v301
  %v329 = vpop.f32.mrf.mxu0
  %v330 = vadd.f32 %v289, %v329
  %331 = vmatmul.f32.gmra.mxu0 %v304
  %v332 = vpop.f32.mrf.mxu0
  %v333 = vadd.f32 %v292, %v332
  %334 = vdwg.mxu0
  %v335 = vld [vmem:[%s7] sm:$0x1]
  %v337 = vperm.slane %v335, 0
  %v339 = vadd.f32 %v324, %v337
  %v340 = vadd.f32 %v327, %v337
  %v341 = vadd.f32 %v330, %v337
  %v342 = vadd.f32 %v333, %v337
  %v343 = vmax.f32 %v339, 0.0
  %v344 = vmax.f32 %v340, 0.0
  %v345 = vmax.f32 %v341, 0.0
  %v346 = vmax.f32 %v342, 0.0
  %v347 = vadd.f32 %v343, %v208
  %v348 = vadd.f32 %v344, %v209
  %v349 = vadd.f32 %v345, %v210
  %v350 = vadd.f32 %v346, %v211
  %355 = vrot.lane.b32.xlu0 %v347, 32
  %v356 = vpop.permute.xlu0 %355
  %357 = vrot.lane.b32.xlu0 %v348, 32
  %v358 = vpop.permute.xlu0 %357
  %359 = vrot.lane.b32.xlu0 %v349, 32
  %v360 = vpop.permute.xlu0 %359
  %361 = vrot.lane.b32.xlu0 %v350, 32
  %v362 = vpop.permute.xlu0 %361
  %vm367 = vcmask 523520
  %368 = vst.msk [vmem:[#allocation2] sm:$0xff] %vm367, %v356
  %369 = vst.msk [vmem:[#allocation2 + $0x10] sm:$0xff] %vm367, %v358
  %370 = vst.msk [vmem:[#allocation2 + $0x20] sm:$0xff] %vm367, %v360
  %371 = vst.msk [vmem:[#allocation2 + $0x30] sm:$0xff] %vm367, %v362
  %372 = vmatpush.msra.mxu0 0.0
  %373 = vmatpush.msra.mxu0 0.0
  %374 = vmatpush.msra.mxu0 0.0
  %375 = vmatpush.msra.mxu0 0.0
  %376 = vmatpush.msra.mxu0 0.0
  %377 = vmatpush.msra.mxu0 0.0
  %378 = vmatpush.msra.mxu0 0.0
  %379 = vmatpush.msra.mxu0 0.0
  %380 = vmatpush.msra.mxu0 0.0
  %381 = vmatpush.msra.mxu0 0.0
  %382 = vmatpush.msra.mxu0 0.0
  %383 = vmatpush.msra.mxu0 0.0
  %384 = vmatpush.msra.mxu0 %v350
  %385 = vmatpush.msra.mxu0 %v349
  %386 = vmatpush.msra.mxu0 %v348
  %387 = vmatpush.msra.mxu0 %v347
  %388 = vmatmul.f32.gmra.mxu0 %v75
  %v389 = vpop.f32.mrf.mxu0
  %v390 = vadd.f32 0.0, %v389
  %391 = vmatmul.f32.gmra.mxu0 %v78
  %v392 = vpop.f32.mrf.mxu0
  %v393 = vadd.f32 0.0, %v392
  %394 = vmatmul.f32.gmra.mxu0 %v81
  %v395 = vpop.f32.mrf.mxu0
  %v396 = vadd.f32 0.0, %v395
  %397 = vmatmul.f32.gmra.mxu0 %v84
  %v398 = vpop.f32.mrf.mxu0
  %v399 = vadd.f32 0.0, %v398
  %400 = vdwg.mxu0
  %v401 = vld [vmem:[%s8] sm:$0xff]
  %v402 = vld [vmem:[%s8 + $0x8] sm:$0xff]
  %v403 = vld [vmem:[%s8 + $0x10] sm:$0xff]
  %v404 = vld [vmem:[%s8 + $0x18] sm:$0xff]
  %v405 = vld [vmem:[%s9] sm:$0xff]
  %v406 = vld [vmem:[%s9 + $0x8] sm:$0xff]
  %v407 = vld [vmem:[%s9 + $0x10] sm:$0xff]
  %v408 = vld [vmem:[%s9 + $0x18] sm:$0xff]
  %v410 = vsel %vm73, %v390, 0
  %v413 = vsel %vm73, %v393, 0
  %v416 = vsel %vm73, %v396, 0
  %v419 = vsel %vm73, %v399, 0
  %421 = vmatpush.msra.mxu0 0.0
  %422 = vmatpush.msra.mxu0 0.0
  %423 = vmatpush.msra.mxu0 0.0
  %424 = vmatpush.msra.mxu0 0.0
  %425 = vmatpush.msra.mxu0 0.0
  %426 = vmatpush.msra.mxu0 0.0
  %427 = vmatpush.msra.mxu0 0.0
  %428 = vmatpush.msra.mxu0 0.0
  %429 = vmatpush.msra.mxu0 0.0
  %430 = vmatpush.msra.mxu0 0.0
  %431 = vmatpush.msra.mxu0 0.0
  %432 = vmatpush.msra.mxu0 0.0
  %433 = vmatpush.msra.mxu0 %v408
  %434 = vmatpush.msra.mxu0 %v407
  %435 = vmatpush.msra.mxu0 %v406
  %436 = vmatpush.msra.mxu0 %v405
  %437 = vmatmul.f32.gmra.mxu0 %v410
  %v438 = vpop.f32.mrf.mxu0
  %v439 = vadd.f32 0.0, %v438
  %440 = vmatmul.f32.gmra.mxu0 %v413
  %v441 = vpop.f32.mrf.mxu0
  %v442 = vadd.f32 0.0, %v441
  %443 = vmatmul.f32.gmra.mxu0 %v416
  %v444 = vpop.f32.mrf.mxu0
  %v445 = vadd.f32 0.0, %v444
  %446 = vmatmul.f32.gmra.mxu0 %v419
  %v447 = vpop.f32.mrf.mxu0
  %v448 = vadd.f32 0.0, %v447
  %449 = vdwg.mxu0
  %v450 = vsel %vm73, %v347, 0
  %v452 = vsel %vm73, %v348, 0
  %v454 = vsel %vm73, %v349, 0
  %v456 = vsel %vm73, %v350, 0
  %458 = vmatpush.msra.mxu0 0.0
  %459 = vmatpush.msra.mxu0 0.0
  %460 = vmatpush.msra.mxu0 0.0
  %461 = vmatpush.msra.mxu0 0.0
  %462 = vmatpush.msra.mxu0 0.0
  %463 = vmatpush.msra.mxu0 0.0
  %464 = vmatpush.msra.mxu0 0.0
  %465 = vmatpush.msra.mxu0 0.0
  %466 = vmatpush.msra.mxu0 0.0
  %467 = vmatpush.msra.mxu0 0.0
  %468 = vmatpush.msra.mxu0 0.0
  %469 = vmatpush.msra.mxu0 0.0
  %470 = vmatpush.msra.mxu0 %v404
  %471 = vmatpush.msra.mxu0 %v403
  %472 = vmatpush.msra.mxu0 %v402
  %473 = vmatpush.msra.mxu0 %v401
  %474 = vmatmul.f32.gmra.mxu0 %v450
  %v475 = vpop.f32.mrf.mxu0
  %v476 = vadd.f32 %v439, %v475
  %477 = vmatmul.f32.gmra.mxu0 %v452
  %v478 = vpop.f32.mrf.mxu0
  %v479 = vadd.f32 %v442, %v478
  %480 = vmatmul.f32.gmra.mxu0 %v454
  %v481 = vpop.f32.mrf.mxu0
  %v482 = vadd.f32 %v445, %v481
  %483 = vmatmul.f32.gmra.mxu0 %v456
  %v484 = vpop.f32.mrf.mxu0
  %v485 = vadd.f32 %v448, %v484
  %486 = vdwg.mxu0
  %v487 = vld [vmem:[%s10] sm:$0x1]
  %v489 = vperm.slane %v487, 0
  %v491 = vadd.f32 %v476, %v489
  %v492 = vadd.f32 %v479, %v489
  %v493 = vadd.f32 %v482, %v489
  %v494 = vadd.f32 %v485, %v489
  %v495 = vmax.f32 %v491, 0.0
  %v496 = vmax.f32 %v492, 0.0
  %v497 = vmax.f32 %v493, 0.0
  %v498 = vmax.f32 %v494, 0.0
  %v499 = vadd.f32 %v495, %v347
  %v500 = vadd.f32 %v496, %v348
  %v501 = vadd.f32 %v497, %v349
  %v502 = vadd.f32 %v498, %v350
  %507 = vrot.lane.b32.xlu0 %v499, 64
  %v508 = vpop.permute.xlu0 %507
  %509 = vrot.lane.b32.xlu0 %v500, 64
  %v510 = vpop.permute.xlu0 %509
  %511 = vrot.lane.b32.xlu0 %v501, 64
  %v512 = vpop.permute.xlu0 %511
  %513 = vrot.lane.b32.xlu0 %v502, 64
  %v514 = vpop.permute.xlu0 %513
  %vm519 = vcmask 785920
  %520 = vst.msk [vmem:[#allocation2] sm:$0xff] %vm519, %v508
  %521 = vst.msk [vmem:[#allocation2 + $0x10] sm:$0xff] %vm519, %v510
  %522 = vst.msk [vmem:[#allocation2 + $0x20] sm:$0xff] %vm519, %v512
  %523 = vst.msk [vmem:[#allocation2 + $0x30] sm:$0xff] %vm519, %v514
  %524 = vmatpush.msra.mxu0 0.0
  %525 = vmatpush.msra.mxu0 0.0
  %526 = vmatpush.msra.mxu0 0.0
  %527 = vmatpush.msra.mxu0 0.0
  %528 = vmatpush.msra.mxu0 0.0
  %529 = vmatpush.msra.mxu0 0.0
  %530 = vmatpush.msra.mxu0 0.0
  %531 = vmatpush.msra.mxu0 0.0
  %532 = vmatpush.msra.mxu0 0.0
  %533 = vmatpush.msra.mxu0 0.0
  %534 = vmatpush.msra.mxu0 0.0
  %535 = vmatpush.msra.mxu0 0.0
  %536 = vmatpush.msra.mxu0 %v502
  %537 = vmatpush.msra.mxu0 %v501
  %538 = vmatpush.msra.mxu0 %v500
  %539 = vmatpush.msra.mxu0 %v499
  %540 = vmatmul.f32.gmra.mxu0 %v75
  %v541 = vpop.f32.mrf.mxu0
  %v542 = vadd.f32 0.0, %v541
  %543 = vmatmul.f32.gmra.mxu0 %v78
  %v544 = vpop.f32.mrf.mxu0
  %v545 = vadd.f32 0.0, %v544
  %546 = vmatmul.f32.gmra.mxu0 %v81
  %v547 = vpop.f32.mrf.mxu0
  %v548 = vadd.f32 0.0, %v547
  %549 = vmatmul.f32.gmra.mxu0 %v84
  %v550 = vpop.f32.mrf.mxu0
  %v551 = vadd.f32 0.0, %v550
  %552 = vdwg.mxu0
  %v553 = vld [vmem:[%s11] sm:$0xff]
  %v554 = vld [vmem:[%s11 + $0x8] sm:$0xff]
  %v555 = vld [vmem:[%s11 + $0x10] sm:$0xff]
  %v556 = vld [vmem:[%s11 + $0x18] sm:$0xff]
  %v557 = vld [vmem:[%s12] sm:$0xff]
  %v558 = vld [vmem:[%s12 + $0x8] sm:$0xff]
  %v559 = vld [vmem:[%s12 + $0x10] sm:$0xff]
  %v560 = vld [vmem:[%s12 + $0x18] sm:$0xff]
  %v562 = vsel %vm73, %v542, 0
  %v565 = vsel %vm73, %v545, 0
  %v568 = vsel %vm73, %v548, 0
  %v571 = vsel %vm73, %v551, 0
  %573 = vmatpush.msra.mxu0 0.0
  %574 = vmatpush.msra.mxu0 0.0
  %575 = vmatpush.msra.mxu0 0.0
  %576 = vmatpush.msra.mxu0 0.0
  %577 = vmatpush.msra.mxu0 0.0
  %578 = vmatpush.msra.mxu0 0.0
  %579 = vmatpush.msra.mxu0 0.0
  %580 = vmatpush.msra.mxu0 0.0
  %581 = vmatpush.msra.mxu0 0.0
  %582 = vmatpush.msra.mxu0 0.0
  %583 = vmatpush.msra.mxu0 0.0
  %584 = vmatpush.msra.mxu0 0.0
  %585 = vmatpush.msra.mxu0 %v560
  %586 = vmatpush.msra.mxu0 %v559
  %587 = vmatpush.msra.mxu0 %v558
  %588 = vmatpush.msra.mxu0 %v557
  %589 = vmatmul.f32.gmra.mxu0 %v562
  %v590 = vpop.f32.mrf.mxu0
  %v591 = vadd.f32 0.0, %v590
  %592 = vmatmul.f32.gmra.mxu0 %v565
  %v593 = vpop.f32.mrf.mxu0
  %v594 = vadd.f32 0.0, %v593
  %595 = vmatmul.f32.gmra.mxu0 %v568
  %v596 = vpop.f32.mrf.mxu0
  %v597 = vadd.f32 0.0, %v596
  %598 = vmatmul.f32.gmra.mxu0 %v571
  %v599 = vpop.f32.mrf.mxu0
  %v600 = vadd.f32 0.0, %v599
  %601 = vdwg.mxu0
  %v602 = vsel %vm73, %v499, 0
  %v604 = vsel %vm73, %v500, 0
  %v606 = vsel %vm73, %v501, 0
  %v608 = vsel %vm73, %v502, 0
  %610 = vmatpush.msra.mxu0 0.0
  %611 = vmatpush.msra.mxu0 0.0
  %612 = vmatpush.msra.mxu0 0.0
  %613 = vmatpush.msra.mxu0 0.0
  %614 = vmatpush.msra.mxu0 0.0
  %615 = vmatpush.msra.mxu0 0.0
  %616 = vmatpush.msra.mxu0 0.0
  %617 = vmatpush.msra.mxu0 0.0
  %618 = vmatpush.msra.mxu0 0.0
  %619 = vmatpush.msra.mxu0 0.0
  %620 = vmatpush.msra.mxu0 0.0
  %621 = vmatpush.msra.mxu0 0.0
  %622 = vmatpush.msra.mxu0 %v556
  %623 = vmatpush.msra.mxu0 %v555
  %624 = vmatpush.msra.mxu0 %v554
  %625 = vmatpush.msra.mxu0 %v553
  %626 = vmatmul.f32.gmra.mxu0 %v602
  %v627 = vpop.f32.mrf.mxu0
  %v628 = vadd.f32 %v591, %v627
  %629 = vmatmul.f32.gmra.mxu0 %v604
  %v630 = vpop.f32.mrf.mxu0
  %v631 = vadd.f32 %v594, %v630
  %632 = vmatmul.f32.gmra.mxu0 %v606
  %v633 = vpop.f32.mrf.mxu0
  %v634 = vadd.f32 %v597, %v633
  %635 = vmatmul.f32.gmra.mxu0 %v608
  %v636 = vpop.f32.mrf.mxu0
  %v637 = vadd.f32 %v600, %v636
  %638 = vdwg.mxu0
  %v639 = vld [vmem:[%s13] sm:$0x1]
  %v641 = vperm.slane %v639, 0
  %v643 = vadd.f32 %v628, %v641
  %v644 = vadd.f32 %v631, %v641
  %v645 = vadd.f32 %v634, %v641
  %v646 = vadd.f32 %v637, %v641
  %v647 = vmax.f32 %v643, 0.0
  %v648 = vmax.f32 %v644, 0.0
  %v649 = vmax.f32 %v645, 0.0
  %v650 = vmax.f32 %v646, 0.0
  %v651 = vadd.f32 %v647, %v499
  %v652 = vadd.f32 %v648, %v500
  %v653 = vadd.f32 %v649, %v501
  %v654 = vadd.f32 %v650, %v502
  %659 = vrot.lane.b32.xlu0 %v651, 96
  %v660 = vpop.permute.xlu0 %659
  %661 = vrot.lane.b32.xlu0 %v652, 96
  %v662 = vpop.permute.xlu0 %661
  %663 = vrot.lane.b32.xlu0 %v653, 96
  %v664 = vpop.permute.xlu0 %663
  %665 = vrot.lane.b32.xlu0 %v654, 96
  %v666 = vpop.permute.xlu0 %665
  %vm671 = vcmask 1048320
  %672 = vst.msk [vmem:[#allocation2] sm:$0xff] %vm671, %v660
  %673 = vst.msk [vmem:[#allocation2 + $0x10] sm:$0xff] %vm671, %v662
  %674 = vst.msk [vmem:[#allocation2 + $0x20] sm:$0xff] %vm671, %v664
  %675 = vst.msk [vmem:[#allocation2 + $0x30] sm:$0xff] %vm671, %v666
  %v676 = vld [vmem:[#allocation2] sm:$0xff]
  %v677 = vld [vmem:[#allocation2 + $0x10] sm:$0xff]
  %v678 = vld [vmem:[#allocation2 + $0x20] sm:$0xff]
  %v679 = vld [vmem:[#allocation2 + $0x30] sm:$0xff]
  %v680 = vld [vmem:[%s14] sm:$0xff]
  %v681 = vld [vmem:[%s14 + $0x8] sm:$0xff]
  %v682 = vld [vmem:[%s14 + $0x10] sm:$0xff]
  %v683 = vld [vmem:[%s14 + $0x18] sm:$0xff]
  %v684 = vld [vmem:[%s14 + $0x20] sm:$0xff]
  %v685 = vld [vmem:[%s14 + $0x28] sm:$0xff]
  %v686 = vld [vmem:[%s14 + $0x30] sm:$0xff]
  %v687 = vld [vmem:[%s14 + $0x38] sm:$0xff]
  %v688 = vld [vmem:[%s14 + $0x40] sm:$0xff]
  %v689 = vld [vmem:[%s14 + $0x48] sm:$0xff]
  %v690 = vld [vmem:[%s14 + $0x50] sm:$0xff]
  %v691 = vld [vmem:[%s14 + $0x58] sm:$0xff]
  %v692 = vld [vmem:[%s14 + $0x60] sm:$0xff]
  %v693 = vld [vmem:[%s14 + $0x68] sm:$0xff]
  %v694 = vld [vmem:[%s14 + $0x70] sm:$0xff]
  %v695 = vld [vmem:[%s14 + $0x78] sm:$0xff]
  %v696 = vld [vmem:[%s15] sm:$0x1]
  %v698 = vperm.slane %v696, 0
  %700 = vmatpush.msra.mxu0 %v695
  %701 = vmatpush.msra.mxu0 %v694
  %702 = vmatpush.msra.mxu0 %v693
  %703 = vmatpush.msra.mxu0 %v692
  %704 = vmatpush.msra.mxu0 %v691
  %705 = vmatpush.msra.mxu0 %v690
  %706 = vmatpush.msra.mxu0 %v689
  %707 = vmatpush.msra.mxu0 %v688
  %708 = vmatpush.msra.mxu0 %v687
  %709 = vmatpush.msra.mxu0 %v686
  %710 = vmatpush.msra.mxu0 %v685
  %711 = vmatpush.msra.mxu0 %v684
  %712 = vmatpush.msra.mxu0 %v683
  %713 = vmatpush.msra.mxu0 %v682
  %714 = vmatpush.msra.mxu0 %v681
  %715 = vmatpush.msra.mxu0 %v680
  %716 = vmatmul.f32.gmra.mxu0 %v676
  %v717 = vpop.f32.mrf.mxu0
  %v718 = vadd.f32 %v698, %v717
  %719 = vmatmul.f32.gmra.mxu0 %v677
  %v720 = vpop.f32.mrf.mxu0
  %v721 = vadd.f32 %v698, %v720
  %722 = vmatmul.f32.gmra.mxu0 %v678
  %v723 = vpop.f32.mrf.mxu0
  %v724 = vadd.f32 %v698, %v723
  %725 = vmatmul.f32.gmra.mxu0 %v679
  %v726 = vpop.f32.mrf.mxu0
  %v727 = vadd.f32 %v698, %v726
  %728 = vdwg.mxu0
  %v729 = vmax.f32 %v718, 0.0
  %v730 = vmax.f32 %v721, 0.0
  %v731 = vmax.f32 %v724, 0.0
  %v732 = vmax.f32 %v727, 0.0
  %v733 = vsel %vm73, %v729, -inf
  %v734 = vsel %vm73, %v730, -inf
  %v735 = vmax.f32 %v733, %v734
  %v736 = vrot.slane %v735, 4
  %v737 = vmax.f32 %v735, %v736
  %v738 = vrot.slane %v737, 2
  %v739 = vmax.f32 %v737, %v738
  %v740 = vrot.slane %v739, 1
  %v741 = vmax.f32 %v739, %v740
  %742 = vst.msk [vmem:[#allocation2 + $0x8] sm:$0xff] %vm73, %v741
  %743 = vst.msk [vmem:[#allocation2 + $0x18] sm:$0xff] %vm73, %v741
  %v744 = vsel %vm73, %v731, -inf
  %v745 = vsel %vm73, %v732, -inf
  %v746 = vmax.f32 %v744, %v745
  %v747 = vrot.slane %v746, 4
  %v748 = vmax.f32 %v746, %v747
  %v749 = vrot.slane %v748, 2
  %v750 = vmax.f32 %v748, %v749
  %v751 = vrot.slane %v750, 1
  %v752 = vmax.f32 %v750, %v751
  %753 = vst.msk [vmem:[#allocation2 + $0x28] sm:$0xff] %vm73, %v752
  %754 = vst.msk [vmem:[#allocation2 + $0x38] sm:$0xff] %vm73, %v752
  %v755 = vld [vmem:[#allocation2] sm:$0xff]
  %v756 = vld [vmem:[#allocation2 + $0x8] sm:$0xff]
  %v757 = vld [vmem:[#allocation2 + $0x10] sm:$0xff]
  %v758 = vld [vmem:[#allocation2 + $0x18] sm:$0xff]
  %v759 = vld [vmem:[#allocation2 + $0x20] sm:$0xff]
  %v760 = vld [vmem:[#allocation2 + $0x28] sm:$0xff]
  %v761 = vld [vmem:[#allocation2 + $0x30] sm:$0xff]
  %v762 = vld [vmem:[#allocation2 + $0x38] sm:$0xff]
  %v763 = vld [vmem:[%s16] sm:$0xff]
  %v764 = vld [vmem:[%s16 + $0x8] sm:$0xff]
  %v765 = vld [vmem:[%s16 + $0x10] sm:$0xff]
  %v766 = vld [vmem:[%s16 + $0x18] sm:$0xff]
  %v767 = vld [vmem:[%s16 + $0x20] sm:$0xff]
  %v768 = vld [vmem:[%s16 + $0x28] sm:$0xff]
  %v769 = vld [vmem:[%s16 + $0x30] sm:$0xff]
  %v770 = vld [vmem:[%s16 + $0x38] sm:$0xff]
  %v771 = vld [vmem:[%s16 + $0x40] sm:$0xff]
  %v772 = vld [vmem:[%s16 + $0x48] sm:$0xff]
  %v773 = vld [vmem:[%s16 + $0x50] sm:$0xff]
  %v774 = vld [vmem:[%s16 + $0x58] sm:$0xff]
  %v775 = vld [vmem:[%s16 + $0x60] sm:$0xff]
  %v776 = vld [vmem:[%s16 + $0x68] sm:$0xff]
  %v777 = vld [vmem:[%s16 + $0x70] sm:$0xff]
  %v778 = vld [vmem:[%s16 + $0x78] sm:$0xff]
  %v779 = vld [vmem:[%s16 + $0x80] sm:$0xff]
  %v780 = vld [vmem:[%s16 + $0x88] sm:$0xff]
  %v781 = vld [vmem:[%s16 + $0x90] sm:$0xff]
  %v782 = vld [vmem:[%s16 + $0x98] sm:$0xff]
  %v783 = vld [vmem:[%s17] sm:$0x1]
  %v785 = vperm.slane %v783, 0
  %v788 = vsel %vm73, %v756, 0
  %v791 = vsel %vm73, %v758, 0
  %v794 = vsel %vm73, %v760, 0
  %v797 = vsel %vm73, %v762, 0
  %799 = vmatpush.msra.mxu0 %v778
  %800 = vmatpush.msra.mxu0 %v777
  %801 = vmatpush.msra.mxu0 %v776
  %802 = vmatpush.msra.mxu0 %v775
  %803 = vmatpush.msra.mxu0 %v774
  %804 = vmatpush.msra.mxu0 %v773
  %805 = vmatpush.msra.mxu0 %v772
  %806 = vmatpush.msra.mxu0 %v771
  %807 = vmatpush.msra.mxu0 %v770
  %808 = vmatpush.msra.mxu0 %v769
  %809 = vmatpush.msra.mxu0 %v768
  %810 = vmatpush.msra.mxu0 %v767
  %811 = vmatpush.msra.mxu0 %v766
  %812 = vmatpush.msra.mxu0 %v765
  %813 = vmatpush.msra.mxu0 %v764
  %814 = vmatpush.msra.mxu0 %v763
  %815 = vmatmul.f32.gmra.mxu0 %v755
  %v816 = vpop.f32.mrf.mxu0
  %v817 = vadd.f32 %v785, %v816
  %818 = vmatmul.f32.gmra.mxu0 %v757
  %v819 = vpop.f32.mrf.mxu0
  %v820 = vadd.f32 %v785, %v819
  %821 = vmatmul.f32.gmra.mxu0 %v759
  %v822 = vpop.f32.mrf.mxu0
  %v823 = vadd.f32 %v785, %v822
  %824 = vmatmul.f32.gmra.mxu0 %v761
  %v825 = vpop.f32.mrf.mxu0
  %v826 = vadd.f32 %v785, %v825
  %827 = vdwg.mxu0
  %828 = vmatpush.msra.mxu0 0.0
  %829 = vmatpush.msra.mxu0 0.0
  %830 = vmatpush.msra.mxu0 0.0
  %831 = vmatpush.msra.mxu0 0.0
  %832 = vmatpush.msra.mxu0 0.0
  %833 = vmatpush.msra.mxu0 0.0
  %834 = vmatpush.msra.mxu0 0.0
  %835 = vmatpush.msra.mxu0 0.0
  %836 = vmatpush.msra.mxu0 0.0
  %837 = vmatpush.msra.mxu0 0.0
  %838 = vmatpush.msra.mxu0 0.0
  %839 = vmatpush.msra.mxu0 0.0
  %840 = vmatpush.msra.mxu0 %v782
  %841 = vmatpush.msra.mxu0 %v781
  %842 = vmatpush.msra.mxu0 %v780
  %843 = vmatpush.msra.mxu0 %v779
  %844 = vmatmul.f32.gmra.mxu0 %v788
  %v845 = vpop.f32.mrf.mxu0
  %v846 = vadd.f32 %v817, %v845
  %847 = vmatmul.f32.gmra.mxu0 %v791
  %v848 = vpop.f32.mrf.mxu0
  %v849 = vadd.f32 %v820, %v848
  %850 = vmatmul.f32.gmra.mxu0 %v794
  %v851 = vpop.f32.mrf.mxu0
  %v852 = vadd.f32 %v823, %v851
  %853 = vmatmul.f32.gmra.mxu0 %v797
  %v854 = vpop.f32.mrf.mxu0
  %v855 = vadd.f32 %v826, %v854
  %856 = vdwg.mxu0
  %v857 = vmax.f32 %v846, 0.0
  %v858 = vmax.f32 %v849, 0.0
  %v859 = vmax.f32 %v852, 0.0
  %v860 = vmax.f32 %v855, 0.0
  %v861 = vld [vmem:[%s18] sm:$0xff]
  %v862 = vld [vmem:[%s18 + $0x8] sm:$0xff]
  %v863 = vld [vmem:[%s18 + $0x10] sm:$0xff]
  %v864 = vld [vmem:[%s18 + $0x18] sm:$0xff]
  %v865 = vld [vmem:[%s18 + $0x20] sm:$0xff]
  %v866 = vld [vmem:[%s18 + $0x28] sm:$0xff]
  %v867 = vld [vmem:[%s18 + $0x30] sm:$0xff]
  %v868 = vld [vmem:[%s18 + $0x38] sm:$0xff]
  %v869 = vld [vmem:[%s19] sm:$0x1]
  %v871 = vperm.slane %v869, 0
  %vm873 = vcmask 523264
  %v875 = vsel %vm873, %v857, 0
  %v878 = vsel %vm873, %v858, 0
  %v881 = vsel %vm873, %v859, 0
  %v884 = vsel %vm873, %v860, 0
  %886 = vmatpush.msra.mxu0 0.0
  %887 = vmatpush.msra.mxu0 0.0
  %888 = vmatpush.msra.mxu0 0.0
  %889 = vmatpush.msra.mxu0 0.0
  %890 = vmatpush.msra.mxu0 0.0
  %891 = vmatpush.msra.mxu0 0.0
  %892 = vmatpush.msra.mxu0 0.0
  %893 = vmatpush.msra.mxu0 0.0
  %894 = vmatpush.msra.mxu0 %v868
  %895 = vmatpush.msra.mxu0 %v867
  %896 = vmatpush.msra.mxu0 %v866
  %897 = vmatpush.msra.mxu0 %v865
  %898 = vmatpush.msra.mxu0 %v864
  %899 = vmatpush.msra.mxu0 %v863
  %900 = vmatpush.msra.mxu0 %v862
  %901 = vmatpush.msra.mxu0 %v861
  %902 = vmatmul.f32.gmra.mxu0 %v875
  %v903 = vpop.f32.mrf.mxu0
  %v904 = vadd.f32 %v871, %v903
  %905 = vmatmul.f32.gmra.mxu0 %v878
  %v906 = vpop.f32.mrf.mxu0
  %v907 = vadd.f32 %v871, %v906
  %908 = vmatmul.f32.gmra.mxu0 %v881
  %v909 = vpop.f32.mrf.mxu0
  %v910 = vadd.f32 %v871, %v909
  %911 = vmatmul.f32.gmra.mxu0 %v884
  %v912 = vpop.f32.mrf.mxu0
  %v913 = vadd.f32 %v871, %v912
  %914 = vdwg.mxu0
  %vm915 = vcmask 31744
  %v916 = vsel %vm915, %v904, -inf
  %917 = vmax.xlane.f32.xlu0 %v916
  %v918 = vpop.xlane.xlu0 %917
  %v919 = vsel %vm915, %v907, -inf
  %920 = vmax.xlane.f32.xlu0 %v919
  %v921 = vpop.xlane.xlu0 %920
  %v922 = vsel %vm915, %v910, -inf
  %923 = vmax.xlane.f32.xlu0 %v922
  %v924 = vpop.xlane.xlu0 %923
  %v925 = vsel %vm915, %v913, -inf
  %926 = vmax.xlane.f32.xlu0 %v925
  %v927 = vpop.xlane.xlu0 %926
  %v928 = vsub.f32 %v904, %v918
  %v929 = vsub.f32 %v907, %v921
  %v930 = vsub.f32 %v910, %v924
  %v931 = vsub.f32 %v913, %v927
  %v932 = vmul.f32 %v928, 1.442695
  %v933 = vpow.pop %v932
  %v934 = vmul.f32 %v929, 1.442695
  %v935 = vpow.pop %v934
  %v936 = vmul.f32 %v930, 1.442695
  %v937 = vpow.pop %v936
  %v938 = vmul.f32 %v931, 1.442695
  %v939 = vpow.pop %v938
  %v940 = vsel %vm915, %v933, 0.0
  %941 = vadd.xlane.f32.xlu0 %v940
  %v942 = vpop.xlane.xlu0 %941
  %v943 = vsel %vm915, %v935, 0.0
  %944 = vadd.xlane.f32.xlu0 %v943
  %v945 = vpop.xlane.xlu0 %944
  %v946 = vsel %vm915, %v937, 0.0
  %947 = vadd.xlane.f32.xlu0 %v946
  %v948 = vpop.xlane.xlu0 %947
  %v949 = vsel %vm915, %v939, 0.0
  %950 = vadd.xlane.f32.xlu0 %v949
  %v951 = vpop.xlane.xlu0 %950
  %v952 = vlog2.pop %v942
  %v953 = vmul.f32 %v952, 0.6931472
  %v954 = vlog2.pop %v945
  %v955 = vmul.f32 %v954, 0.6931472
  %v956 = vlog2.pop %v948
  %v957 = vmul.f32 %v956, 0.6931472
  %v958 = vlog2.pop %v951
  %v959 = vmul.f32 %v958, 0.6931472
  %v960 = vsub.f32 %v928, %v953
  %v961 = vsub.f32 %v929, %v955
  %v962 = vsub.f32 %v930, %v957
  %v963 = vsub.f32 %v931, %v959
  %964 = vst.msk [vmem:[%s20] sm:$0xff] %vm915, %v960
  %965 = vst.msk [vmem:[%s20 + $0x8] sm:$0xff] %vm915, %v961
  %966 = vst.msk [vmem:[%s20 + $0x10] sm:$0xff] %vm915, %v962
  %967 = vst.msk [vmem:[%s20 + $0x18] sm:$0xff] %vm915, %v963
  // Predicated region
  $region82: #{sketch_one_line_forward.1} parent=0 // pred_check
    _
  $region83: #{sketch_one_line_forward.1} parent=0 // pred_check_branch
    %969 = sbr.rel (0) target = $region85
  $region84: #{sketch_one_line_forward.1} parent=0 // pred_region
    _
  $region85: #{sketch_one_line_forward.1} parent=0 // pred_fallthru
    _
  // Predicated region
  $region86: #{sketch_one_line_forward.1} parent=0 // pred_check
    _
  $region87: #{sketch_one_line_forward.1} parent=0 // pred_check_branch
    %971 = sbr.rel (0) target = $region89
  $region88: #{sketch_one_line_forward.1} parent=0 // pred_region
    _
  $region89: #{sketch_one_line_forward.1} parent=0 // pred_fallthru
    _

</llo_original>
